<compile_context>
chip_gen: v7x
topology: tpu7x:2x2x1
jax: 0.10.0
libtpu: 0.0.40
codegen_flags: <defaults>
</compile_context>

<pallas_src>
import functools

import jax
import jax.numpy as jnp
import numpy as np
from jax.experimental import pallas as pl
from jax.experimental.pallas import tpu as pltpu


# ----------------------------------------------------------------------------
# Tap-phase plan: group taps by (k*dilation) % stride.
# ----------------------------------------------------------------------------
def _phase_plan(K, stride, dilation):
    taps = {}
    for k in range(K):
        taps.setdefault((k * dilation) % stride, []).append(k)
    phases = sorted(taps)
    kp_max = max(len(taps[p]) for p in phases)
    plan = []
    for p in phases:
        ks = taps[p]
        # l0 offsets (in phase-decimated coordinates); pad to kp_max with dummy
        # taps (their weights are zero-padded, so l0=0 is safe and inert).
        l0s = tuple((k * dilation) // stride for k in ks) + (0,) * (kp_max - len(ks))
        plan.append((p, tuple(ks), l0s))
    return plan, kp_max


# ----------------------------------------------------------------------------
# Pallas kernel: one (group[, cout-block]) tile, batch folded into the matmul.
#   channels_last=True  ("A"):  x (1,s,N,Lps,Cin_g)  w (1,P,Kp*Cin_g,tc)
#                               b (1,1,tc)           o (1,N*Lout,tc)
#   channels_last=False ("B"):  x (1,s,N,Cin_g,Lps)  w (1,P,Cout_g,Kp*Cin_g)
#                               b (1,Cout_g,1)       o (1,Cout_g,N*Lout)
# One MXU matmul per active tap-phase (in-VMEM im2col via concatenate).
# ----------------------------------------------------------------------------
def _gconv_kernel(x_ref, w_ref, b_ref, o_ref, *, phase_meta, Lout, N, leaky,
                  channels_last):
    parts = []
    for pi, (p, l0s) in enumerate(phase_meta):
        if channels_last:            # "A": rows = (n, l), cols = Cout tile
            per_n = [
                jnp.concatenate(
                    [x_ref[0, p, n, l0:l0 + Lout, :] for l0 in l0s], axis=-1)
                for n in range(N)]
            lhs = jnp.concatenate(per_n, axis=0).astype(jnp.bfloat16)
            parts.append(jnp.dot(lhs, w_ref[0, pi],
                                 preferred_element_type=jnp.float32))
        else:                        # "B": rows = Cout_g, cols = (n, l)
            per_n = [
                jnp.concatenate(
                    [x_ref[0, p, n, :, l0:l0 + Lout] for l0 in l0s], axis=0)
                for n in range(N)]
            rhs = jnp.concatenate(per_n, axis=-1).astype(jnp.bfloat16)
            parts.append(jnp.dot(w_ref[0, pi], rhs,
                                 preferred_element_type=jnp.float32))
    # Balanced-tree sum of the (<= stride) per-phase partials.
    while len(parts) > 1:
        nxt = [parts[i] + parts[i + 1] for i in range(0, len(parts) - 1, 2)]
        if len(parts) % 2:
            nxt.append(parts[-1])
        parts = nxt
    acc = parts[0] + b_ref[0]                       # f32 bias
    if leaky:
        acc = jnp.where(acc >= 0.0, acc, 0.2 * acc)  # f32 LeakyReLU(0.2)
    o_ref[0] = acc


def pallas_grouped_conv(x, w, b, *, stride, dilation, groups, leaky):
    """Grouped Conv1d body on an already-padded input.

    x: (N, Cin, Lp) f32, w: (Cout, Cin//G, K) f32, b: (Cout,) f32.
    Returns (N, Cout, Lout) f32.
    """
    N, Cin, Lp = x.shape
    Cout, Cin_g, K = w.shape
    G = groups
    Cout_g = Cout // G
    s, d = stride, dilation
    Lout = (Lp - d * (K - 1) - 1) // s + 1
    assert Lout > 0

    plan, Kp = _phase_plan(K, s, d)
    P = len(plan)                      # number of active phases (<= s)
    KpC = Kp * Cin_g                   # per-phase contraction depth
    phase_meta = tuple((p, l0s) for (p, _, l0s) in plan)

    # Orientation: lane axis = Cout tile for deep layers, N*Lout for wide ones.
    orientation = "A" if Cout_g >= 128 else "B"

    # ---- phase-decimate the padded activation along L (pos = l*s + phase) ---
    xg = x.reshape(N, G, Cin_g, Lp)
    Lp2 = -(-Lp // s) * s
    if Lp2 != Lp:
        xg = jnp.pad(xg, ((0, 0), (0, 0), (0, 0), (0, Lp2 - Lp)))
    Lps = Lp2 // s
    xg = xg.reshape(N, G, Cin_g, Lps, s)

    # ---- per-phase weight slabs, tap axis zero-padded to Kp -----------------
    w_r = w.reshape(G, Cout_g, Cin_g, K)
    slabs = []
    for (_, ks, _) in plan:
        wp = jnp.take(w_r, jnp.asarray(ks), axis=-1)      # (G,Cog,Cig,kp)
        if wp.shape[-1] < Kp:
            wp = jnp.pad(wp, ((0, 0), (0, 0), (0, 0), (0, Kp - wp.shape[-1])))
        slabs.append(wp)
    w_ph = jnp.stack(slabs, axis=1)                       # (G,P,Cog,Cig,Kp)

    if orientation == "A":
        xk = jnp.transpose(xg, (1, 4, 0, 3, 2)).astype(jnp.float32)  # (G,s,N,Lps,Cig)
        wk = jnp.transpose(w_ph, (0, 1, 4, 3, 2)).reshape(G, P, KpC, Cout_g)
        bk = b.reshape(G, 1, Cout_g).astype(jnp.float32)
        # Cout blocking for multi-MB weight slabs (streams weights over the grid).
        slab_bytes = P * KpC * Cout_g * 2
        tc = 128 if (Cout_g % 128 == 0 and Cout_g > 128
                     and slab_bytes > (1 << 20)) else Cout_g
        grid = (G, Cout_g // tc)
        out_shape = jax.ShapeDtypeStruct((G, N * Lout, Cout_g), jnp.float32)
        in_specs = [
            pl.BlockSpec((1, s, N, Lps, Cin_g), lambda g, cb: (g, 0, 0, 0, 0)),
            pl.BlockSpec((1, P, KpC, tc), lambda g, cb: (g, 0, 0, cb)),
            pl.BlockSpec((1, 1, tc), lambda g, cb: (g, 0, cb)),
        ]
        out_specs = pl.BlockSpec((1, N * Lout, tc), lambda g, cb: (g, 0, cb))
        dims = ("parallel", "parallel")
    else:
        xk = jnp.transpose(xg, (1, 4, 0, 2, 3))           # (G,s,N,Cig,Lps)
        # bf16 streaming: tap slices are lane-axis slices; even Cin_g keeps the
        # bf16 sublane packing aligned for the in-kernel concatenation.
        xk = xk.astype(jnp.bfloat16 if Cin_g % 2 == 0 else jnp.float32)
        wk = jnp.transpose(w_ph, (0, 1, 2, 4, 3)).reshape(G, P, Cout_g, KpC)
        bk = b.reshape(G, Cout_g, 1).astype(jnp.float32)
        grid = (G,)
        out_shape = jax.ShapeDtypeStruct((G, Cout_g, N * Lout), jnp.float32)
        in_specs = [
            pl.BlockSpec((1, s, N, Cin_g, Lps), lambda g: (g, 0, 0, 0, 0)),
            pl.BlockSpec((1, P, Cout_g, KpC), lambda g: (g, 0, 0, 0)),
            pl.BlockSpec((1, Cout_g, 1), lambda g: (g, 0, 0)),
        ]
        out_specs = pl.BlockSpec((1, Cout_g, N * Lout), lambda g: (g, 0, 0))
        dims = ("parallel",)

    wk = wk.astype(jnp.bfloat16)                          # halve weight DMA

    kernel = functools.partial(
        _gconv_kernel, phase_meta=phase_meta, Lout=Lout, N=N, leaky=leaky,
        channels_last=(orientation == "A"))

    out = pl.pallas_call(
        kernel,
        out_shape=out_shape,
        grid=grid,
        in_specs=in_specs,
        out_specs=out_specs,
        compiler_params=pltpu.CompilerParams(
            dimension_semantics=dims,
            vmem_limit_bytes=32 * 1024 * 1024,
        ),
    )(xk, wk, bk)

    if orientation == "A":
        out = jnp.transpose(out.reshape(G, N, Lout, Cout_g), (1, 0, 3, 2))
    else:
        out = jnp.transpose(out.reshape(G, Cout_g, N, Lout), (2, 0, 1, 3))
    return out.reshape(N, Cout, Lout)


# ----------------------------------------------------------------------------
# Model definition (weight-norm math + layer configs) -- plain JAX glue
# ----------------------------------------------------------------------------
Q = 3  # number of PQMF bands


def weight_norm(v, g):
    # torch.nn.utils.weight_norm, dim=0: w = g * v / ||v||_{dims (1,2)}
    norm = jnp.sqrt(jnp.sum(v * v, axis=(1, 2), keepdims=True))
    norm = jnp.maximum(norm, 1e-12)
    return g * v / norm


def eben_cfgs(dila, q=Q):
    c = [dict(cin=q, cout=30, k=3, s=1, p=1, d=dila, g=q, r=1, lrelu=True)]
    for cin, cout in [(30, 60), (60, 120), (120, 240), (240, 480), (480, 960)]:
        c.append(dict(cin=cin, cout=cout, k=7, s=2, p=3, d=dila, g=q, r=0,
                      lrelu=True))
    c.append(dict(cin=960, cout=960, k=5, s=1, p=2, d=dila, g=q, r=0,
                  lrelu=True))
    c.append(dict(cin=960, cout=1, k=3, s=1, p=1, d=1, g=1, r=0, lrelu=False))
    return c


def melgan_cfgs():
    c = [dict(cin=1, cout=16, k=15, s=1, p=0, d=1, g=1, r=7, lrelu=True)]
    for cin, cout in [(16, 64), (64, 256), (256, 1024), (1024, 1024)]:
        c.append(dict(cin=cin, cout=cout, k=41, s=4, p=20, d=1, g=4, r=0,
                      lrelu=True))
    c.append(dict(cin=1024, cout=1024, k=5, s=1, p=2, d=1, g=1, r=0,
                  lrelu=True))
    c.append(dict(cin=1024, cout=1, k=3, s=1, p=1, d=1, g=1, r=0, lrelu=False))
    return c


ALL_CFGS = [eben_cfgs(1), eben_cfgs(2), eben_cfgs(3), melgan_cfgs()]


def init_layer(key, cfg):
    kv, kg, kb = jax.random.split(key, 3)
    v = 0.1 * jax.random.normal(
        kv, (cfg["cout"], cfg["cin"] // cfg["g"], cfg["k"]), jnp.float32)
    g = jax.random.uniform(kg, (cfg["cout"], 1, 1), jnp.float32,
                           minval=0.5, maxval=1.5)
    b = 0.01 * jax.random.normal(kb, (cfg["cout"],), jnp.float32)
    return {"v": v, "g": g, "b": b}


def init_disc(key, cfgs):
    keys = jax.random.split(key, len(cfgs))
    return [init_layer(k, c) for k, c in zip(keys, cfgs)]


def conv_layer(x, p, cfg):
    """One weight-normed conv block: pad -> grouped conv -> bias -> LeakyReLU."""
    w = weight_norm(p["v"], p["g"])
    b = p["b"]
    if cfg["r"]:
        x = jnp.pad(x, ((0, 0), (0, 0), (cfg["r"], cfg["r"])), mode="reflect")
    if cfg["p"]:
        x = jnp.pad(x, ((0, 0), (0, 0), (cfg["p"], cfg["p"])))
    Cout, Cin_g, K = w.shape
    G = cfg["g"]
    Cout_g = Cout // G
    Lp = x.shape[-1]
    Lout = (Lp - cfg["d"] * (K - 1) - 1) // cfg["s"] + 1
    assert Lout > 0, "input too short for this conv stack"

    if Cout_g >= 16 and Cin_g * K >= 48:
        # MXU-worthy layer -> Pallas kernel.
        return pallas_grouped_conv(x, w, b, stride=cfg["s"], dilation=cfg["d"],
                                   groups=G, leaky=cfg["lrelu"])

    # Tiny layers (1-channel first convs / Cout=1 heads): XLA conv beats an
    # almost empty MXU.
    y = jax.lax.conv_general_dilated(
        x, w, window_strides=(cfg["s"],), padding=[(0, 0)],
        rhs_dilation=(cfg["d"],), dimension_numbers=("NCH", "OIH", "NCH"),
        feature_group_count=G)
    y = y + b[None, :, None]
    if cfg["lrelu"]:
        y = jnp.where(y >= 0, y, 0.2 * y)
    return y


def run_disc(params, cfgs, x):
    embs = [x]
    for p, c in zip(params, cfgs):
        embs.append(conv_layer(embs[-1], p, c))
    return embs


def multiscale_forward(params_all, bands, audio):
    # Mirrors DiscriminatorEBENMultiScales.forward:
    # 3 EBEN discriminators (dilation 1,2,3) on `bands`, then MelGAN on `audio`.
    embeddings = []
    for i in range(3):
        embeddings.append(run_disc(params_all[i], ALL_CFGS[i], bands))
    embeddings.append(run_disc(params_all[3], ALL_CFGS[3], audio))
    return embeddings


# ----------------------------------------------------------------------------
# Self-check of the Pallas grouped conv vs a lax reference (bf16 inputs).
# ----------------------------------------------------------------------------
def _self_check():
    def one_case(key, N, cin, cout, G, K, s, d, pad, rpad, L):
        kx, kv, kg, kb = jax.random.split(key, 4)
        x = jax.random.normal(kx, (N, cin, L), jnp.float32)
        v = 0.1 * jax.random.normal(kv, (cout, cin // G, K), jnp.float32)
        g = jax.random.uniform(kg, (cout, 1, 1), jnp.float32, 0.5, 1.5)
        b = 0.01 * jax.random.normal(kb, (cout,), jnp.float32)
        w = weight_norm(v, g)
        xp = x
        if rpad:
            xp = jnp.pad(xp, ((0, 0), (0, 0), (rpad, rpad)), mode="reflect")
        if pad:
            xp = jnp.pad(xp, ((0, 0), (0, 0), (pad, pad)))
        ref = jax.lax.conv_general_dilated(
            xp.astype(jnp.bfloat16), w.astype(jnp.bfloat16),
            window_strides=(s,), padding=[(0, 0)], rhs_dilation=(d,),
            dimension_numbers=("NCH", "OIH", "NCH"), feature_group_count=G,
            preferred_element_type=jnp.float32)
        ref = ref + b[None, :, None]
        ref = jnp.where(ref >= 0, ref, 0.2 * ref)
        got = pallas_grouped_conv(xp, w, b, stride=s, dilation=d, groups=G,
                                  leaky=True)
        np.testing.assert_allclose(np.asarray(got), np.asarray(ref),
                                   rtol=2e-2, atol=2e-2)

    ks = jax.random.split(jax.random.PRNGKey(1234), 4)
    # EBEN-like, dilation == stride (single active phase), "B" orientation.
    one_case(ks[0], N=2, cin=60, cout=120, G=3, K=7, s=2, d=2, pad=3, rpad=0,
             L=64)
    # EBEN-like, dilation 3, "A" orientation (Cout_g = 160).
    one_case(ks[1], N=2, cin=240, cout=480, G=3, K=7, s=2, d=3, pad=3, rpad=1,
             L=64)
    # MelGAN L1-like: k=41 stride 4, tiny per-group channels, "B" orientation.
    one_case(ks[2], N=2, cin=16, cout=64, G=4, K=41, s=4, d=1, pad=20, rpad=0,
             L=256)
    # MelGAN deep-like: Cout_g = 256 -> "A" orientation with Cout blocking.
    one_case(ks[3], N=2, cin=256, cout=1024, G=4, K=41, s=4, d=1, pad=20,
             rpad=0, L=64)


# ----------------------------------------------------------------------------
if __name__ == "__main__":
    _self_check()

    key = jax.random.PRNGKey(0)
    kp, kb_, ka = jax.random.split(key, 3)
    pkeys = jax.random.split(kp, 4)
    params_all = [init_disc(pkeys[i], ALL_CFGS[i]) for i in range(4)]

    # bands: (N, q, Lb), audio: (N, 1, La).  Lb=La=1024 is the smallest
    # convenient length keeping every layer's output positive through the
    # dilation=3 EBEN stack (five stride-2 dilated convs).
    N, Lb, La = 2, 1024, 1024
    bands = jax.random.normal(kb_, (N, Q, Lb), jnp.float32)
    audio = jax.random.normal(ka, (N, 1, La), jnp.float32)

    fwd = jax.jit(multiscale_forward)
    embeddings = fwd(params_all, bands, audio)
    jax.block_until_ready(embeddings)
    print("KERNEL_OK")
</pallas_src>

<mosaic_0001>
module attributes {stable_mosaic.version = 11 : i64} {
  func.func @_gconv_kernel(%arg0: i32, %arg1: memref<1x2x2x20x35xbf16, #tpu.memory_space<vmem>>, %arg2: memref<1x1x40x140xbf16, #tpu.memory_space<vmem>>, %arg3: memref<1x40x1xf32, #tpu.memory_space<vmem>>, %arg4: memref<1x40x58xf32, #tpu.memory_space<vmem>>) attributes {dimension_semantics = [#tpu.dimension_semantics<parallel>], iteration_bounds = array<i64: 3>, scalar_prefetch = 0 : i64, scratch_operands = 0 : i64, tpu.core_type = #tpu.core_type<tc>, window_params = [{transform_indices = @transform_0, window_bounds = array<i64: 1, 2, 2, 20, 35>}, {transform_indices = @transform_1, window_bounds = array<i64: 1, 1, 40, 140>}, {transform_indices = @transform_2, window_bounds = array<i64: 1, 40, 1>}, {transform_indices = @transform_3, window_bounds = array<i64: 1, 40, 58>}]} {
    %c0 = arith.constant 0 : index
    %c0_0 = arith.constant 0 : index
    %c0_1 = arith.constant 0 : index
    %c0_2 = arith.constant 0 : index
    %c0_3 = arith.constant 0 : index
    %0 = vector.load %arg1[%c0, %c0_0, %c0_1, %c0_2, %c0_3] : memref<1x2x2x20x35xbf16, #tpu.memory_space<vmem>>, vector<1x1x1x20x29xbf16>
    %1 = vector.shape_cast %0 : vector<1x1x1x20x29xbf16> to vector<20x29xbf16>
    %c0_4 = arith.constant 0 : index
    %c0_5 = arith.constant 0 : index
    %c0_6 = arith.constant 0 : index
    %c0_7 = arith.constant 0 : index
    %c1 = arith.constant 1 : index
    %2 = vector.load %arg1[%c0_4, %c0_5, %c0_6, %c0_7, %c1] : memref<1x2x2x20x35xbf16, #tpu.memory_space<vmem>>, vector<1x1x1x20x29xbf16>
    %3 = vector.shape_cast %2 : vector<1x1x1x20x29xbf16> to vector<20x29xbf16>
    %c0_8 = arith.constant 0 : index
    %c0_9 = arith.constant 0 : index
    %c0_10 = arith.constant 0 : index
    %c0_11 = arith.constant 0 : index
    %c2 = arith.constant 2 : index
    %4 = vector.load %arg1[%c0_8, %c0_9, %c0_10, %c0_11, %c2] : memref<1x2x2x20x35xbf16, #tpu.memory_space<vmem>>, vector<1x1x1x20x29xbf16>
    %5 = vector.shape_cast %4 : vector<1x1x1x20x29xbf16> to vector<20x29xbf16>
    %c0_12 = arith.constant 0 : index
    %c0_13 = arith.constant 0 : index
    %c0_14 = arith.constant 0 : index
    %c0_15 = arith.constant 0 : index
    %c3 = arith.constant 3 : index
    %6 = vector.load %arg1[%c0_12, %c0_13, %c0_14, %c0_15, %c3] : memref<1x2x2x20x35xbf16, #tpu.memory_space<vmem>>, vector<1x1x1x20x29xbf16>
    %7 = vector.shape_cast %6 : vector<1x1x1x20x29xbf16> to vector<20x29xbf16>
    %c0_16 = arith.constant 0 : index
    %c0_17 = arith.constant 0 : index
    %c0_18 = arith.constant 0 : index
    %c0_19 = arith.constant 0 : index
    %c4 = arith.constant 4 : index
    %8 = vector.load %arg1[%c0_16, %c0_17, %c0_18, %c0_19, %c4] : memref<1x2x2x20x35xbf16, #tpu.memory_space<vmem>>, vector<1x1x1x20x29xbf16>
    %9 = vector.shape_cast %8 : vector<1x1x1x20x29xbf16> to vector<20x29xbf16>
    %c0_20 = arith.constant 0 : index
    %c0_21 = arith.constant 0 : index
    %c0_22 = arith.constant 0 : index
    %c0_23 = arith.constant 0 : index
    %c5 = arith.constant 5 : index
    %10 = vector.load %arg1[%c0_20, %c0_21, %c0_22, %c0_23, %c5] : memref<1x2x2x20x35xbf16, #tpu.memory_space<vmem>>, vector<1x1x1x20x29xbf16>
    %11 = vector.shape_cast %10 : vector<1x1x1x20x29xbf16> to vector<20x29xbf16>
    %c0_24 = arith.constant 0 : index
    %c0_25 = arith.constant 0 : index
    %c0_26 = arith.constant 0 : index
    %c0_27 = arith.constant 0 : index
    %c6 = arith.constant 6 : index
    %12 = vector.load %arg1[%c0_24, %c0_25, %c0_26, %c0_27, %c6] : memref<1x2x2x20x35xbf16, #tpu.memory_space<vmem>>, vector<1x1x1x20x29xbf16>
    %13 = vector.shape_cast %12 : vector<1x1x1x20x29xbf16> to vector<20x29xbf16>
    %14 = tpu.concatenate %1, %3, %5, %7, %9, %11, %13 in 0 : vector<20x29xbf16>, vector<20x29xbf16>, vector<20x29xbf16>, vector<20x29xbf16>, vector<20x29xbf16>, vector<20x29xbf16>, vector<20x29xbf16> -> vector<140x29xbf16>
    %c0_28 = arith.constant 0 : index
    %c0_29 = arith.constant 0 : index
    %c1_30 = arith.constant 1 : index
    %c0_31 = arith.constant 0 : index
    %c0_32 = arith.constant 0 : index
    %15 = vector.load %arg1[%c0_28, %c0_29, %c1_30, %c0_31, %c0_32] : memref<1x2x2x20x35xbf16, #tpu.memory_space<vmem>>, vector<1x1x1x20x29xbf16>
    %16 = vector.shape_cast %15 : vector<1x1x1x20x29xbf16> to vector<20x29xbf16>
    %c0_33 = arith.constant 0 : index
    %c0_34 = arith.constant 0 : index
    %c1_35 = arith.constant 1 : index
    %c0_36 = arith.constant 0 : index
    %c1_37 = arith.constant 1 : index
    %17 = vector.load %arg1[%c0_33, %c0_34, %c1_35, %c0_36, %c1_37] : memref<1x2x2x20x35xbf16, #tpu.memory_space<vmem>>, vector<1x1x1x20x29xbf16>
    %18 = vector.shape_cast %17 : vector<1x1x1x20x29xbf16> to vector<20x29xbf16>
    %c0_38 = arith.constant 0 : index
    %c0_39 = arith.constant 0 : index
    %c1_40 = arith.constant 1 : index
    %c0_41 = arith.constant 0 : index
    %c2_42 = arith.constant 2 : index
    %19 = vector.load %arg1[%c0_38, %c0_39, %c1_40, %c0_41, %c2_42] : memref<1x2x2x20x35xbf16, #tpu.memory_space<vmem>>, vector<1x1x1x20x29xbf16>
    %20 = vector.shape_cast %19 : vector<1x1x1x20x29xbf16> to vector<20x29xbf16>
    %c0_43 = arith.constant 0 : index
    %c0_44 = arith.constant 0 : index
    %c1_45 = arith.constant 1 : index
    %c0_46 = arith.constant 0 : index
    %c3_47 = arith.constant 3 : index
    %21 = vector.load %arg1[%c0_43, %c0_44, %c1_45, %c0_46, %c3_47] : memref<1x2x2x20x35xbf16, #tpu.memory_space<vmem>>, vector<1x1x1x20x29xbf16>
    %22 = vector.shape_cast %21 : vector<1x1x1x20x29xbf16> to vector<20x29xbf16>
    %c0_48 = arith.constant 0 : index
    %c0_49 = arith.constant 0 : index
    %c1_50 = arith.constant 1 : index
    %c0_51 = arith.constant 0 : index
    %c4_52 = arith.constant 4 : index
    %23 = vector.load %arg1[%c0_48, %c0_49, %c1_50, %c0_51, %c4_52] : memref<1x2x2x20x35xbf16, #tpu.memory_space<vmem>>, vector<1x1x1x20x29xbf16>
    %24 = vector.shape_cast %23 : vector<1x1x1x20x29xbf16> to vector<20x29xbf16>
    %c0_53 = arith.constant 0 : index
    %c0_54 = arith.constant 0 : index
    %c1_55 = arith.constant 1 : index
    %c0_56 = arith.constant 0 : index
    %c5_57 = arith.constant 5 : index
    %25 = vector.load %arg1[%c0_53, %c0_54, %c1_55, %c0_56, %c5_57] : memref<1x2x2x20x35xbf16, #tpu.memory_space<vmem>>, vector<1x1x1x20x29xbf16>
    %26 = vector.shape_cast %25 : vector<1x1x1x20x29xbf16> to vector<20x29xbf16>
    %c0_58 = arith.constant 0 : index
    %c0_59 = arith.constant 0 : index
    %c1_60 = arith.constant 1 : index
    %c0_61 = arith.constant 0 : index
    %c6_62 = arith.constant 6 : index
    %27 = vector.load %arg1[%c0_58, %c0_59, %c1_60, %c0_61, %c6_62] : memref<1x2x2x20x35xbf16, #tpu.memory_space<vmem>>, vector<1x1x1x20x29xbf16>
    %28 = vector.shape_cast %27 : vector<1x1x1x20x29xbf16> to vector<20x29xbf16>
    %29 = tpu.concatenate %16, %18, %20, %22, %24, %26, %28 in 0 : vector<20x29xbf16>, vector<20x29xbf16>, vector<20x29xbf16>, vector<20x29xbf16>, vector<20x29xbf16>, vector<20x29xbf16>, vector<20x29xbf16> -> vector<140x29xbf16>
    %30 = tpu.concatenate %14, %29 in 1 : vector<140x29xbf16>, vector<140x29xbf16> -> vector<140x58xbf16>
    %c0_63 = arith.constant 0 : index
    %c0_64 = arith.constant 0 : index
    %c0_65 = arith.constant 0 : index
    %c0_66 = arith.constant 0 : index
    %31 = vector.load %arg2[%c0_63, %c0_64, %c0_65, %c0_66] : memref<1x1x40x140xbf16, #tpu.memory_space<vmem>>, vector<1x1x40x140xbf16>
    %32 = vector.shape_cast %31 : vector<1x1x40x140xbf16> to vector<40x140xbf16>
    %cst = arith.constant dense<0.000000e+00> : vector<40x58xf32>
    %33 = tpu.matmul %32, %30, %cst {dimension_numbers = #tpu.dot_dimension_numbers<[1], [0], [0], [1], [0, 0, 1, 1], [], []>} : vector<40x140xbf16>, vector<140x58xbf16>, vector<40x58xf32> -> vector<40x58xf32>
    %c0_67 = arith.constant 0 : index
    %c0_68 = arith.constant 0 : index
    %c0_69 = arith.constant 0 : index
    %34 = vector.load %arg3[%c0_67, %c0_68, %c0_69] : memref<1x40x1xf32, #tpu.memory_space<vmem>>, vector<1x40x1xf32>
    %35 = vector.shape_cast %34 : vector<1x40x1xf32> to vector<40x1xf32>
    %36 = vector.broadcast %35 : vector<40x1xf32> to vector<40x58xf32>
    %37 = arith.addf %33, %36 : vector<40x58xf32>
    %cst_70 = arith.constant 0.000000e+00 : f32
    %38 = vector.broadcast %cst_70 : f32 to vector<40x58xf32>
    %39 = arith.cmpf oge, %37, %38 : vector<40x58xf32>
    %cst_71 = arith.constant 2.000000e-01 : f32
    %40 = vector.broadcast %cst_71 : f32 to vector<40x58xf32>
    %41 = arith.mulf %40, %37 : vector<40x58xf32>
    %42 = arith.select %39, %37, %41 : vector<40x58xi1>, vector<40x58xf32>
    %c0_72 = arith.constant 0 : index
    %c0_73 = arith.constant 0 : index
    %c0_74 = arith.constant 0 : index
    %43 = vector.load %arg4[%c0_72, %c0_73, %c0_74] : memref<1x40x58xf32, #tpu.memory_space<vmem>>, vector<1x40x58xf32>
    %44 = vector.shape_cast %43 : vector<1x40x58xf32> to vector<40x58xf32>
    %45 = vector.shape_cast %42 : vector<40x58xf32> to vector<1x40x58xf32>
    tpu.vector_store %arg4[%c0_72, %c0_73, %c0_74], %45 {strides = array<i32>} : memref<1x40x58xf32, #tpu.memory_space<vmem>>, vector<1x40x58xf32>,
    return
  }
  func.func @transform_0(%arg0: i32) -> (i32, i32, i32, i32, i32) {
    %c0_i32 = arith.constant 0 : i32
    %c0_i32_0 = arith.constant 0 : i32
    %c0_i32_1 = arith.constant 0 : i32
    %c0_i32_2 = arith.constant 0 : i32
    %c0_i32_3 = arith.constant 0 : i32
    return %arg0, %c0_i32, %c0_i32_0, %c0_i32_1, %c0_i32_2 : i32, i32, i32, i32, i32
  }
  func.func @transform_1(%arg0: i32) -> (i32, i32, i32, i32) {
    %c0_i32 = arith.constant 0 : i32
    %c0_i32_0 = arith.constant 0 : i32
    %c0_i32_1 = arith.constant 0 : i32
    %c0_i32_2 = arith.constant 0 : i32
    return %arg0, %c0_i32, %c0_i32_0, %c0_i32_1 : i32, i32, i32, i32
  }
  func.func @transform_2(%arg0: i32) -> (i32, i32, i32) {
    %c0_i32 = arith.constant 0 : i32
    %c0_i32_0 = arith.constant 0 : i32
    %c0_i32_1 = arith.constant 0 : i32
    return %arg0, %c0_i32, %c0_i32_0 : i32, i32, i32
  }
  func.func @transform_3(%arg0: i32) -> (i32, i32, i32) {
    %c0_i32 = arith.constant 0 : i32
    %c0_i32_0 = arith.constant 0 : i32
    %c0_i32_1 = arith.constant 0 : i32
    return %arg0, %c0_i32, %c0_i32_0 : i32, i32, i32
  }
}

</mosaic_0001>

<llo_original>
// kernel: tpu_custom_call.1
$region0: #{tpu_custom_call.1}
  #allocation0 [shape = 'u32[]', space=smem, size = 0x4, offset = 0x4, fixed_abs, tag = 'smem constant byte address 0x4 - core index']
  #allocation1 [shape = 'u32[144,128]{1,0:T(1,128)}', space=vmem, size = 0x12000, scoped, tag = 'internal scratch']
  %s0 = inlined_call_operand.vmem [shape: bf16[3,2,2,20,35], index: 0, kind: input, shape index: {}]
  %s1 = inlined_call_operand.vmem [shape: bf16[3,1,40,140], index: 1, kind: input, shape index: {}]
  %s2 = inlined_call_operand.vmem [shape: f32[3,40,1], index: 2, kind: input, shape index: {}]
  %s3 = inlined_call_operand.hbm [shape: f32[3,40,58], index: 3, kind: output, shape index: {}]
  %s4 = sld [smem:[#allocation0]]
  $region45: #{tpu_custom_call.1} parent=0
    _
  %s6 = ssub.s32 1, %s4
  %s7 = scalar_select 0, %s6, %s4
  $region1: #{tpu_custom_call.1} parent=0
    #allocation2 [shape = 'u8[40960]{0}', space=vmem, size = 0xa000, scoped, tag = 'output window, operand 0']
    #allocation3 [shape = 's32[2]{0}', space=sflag, size = 0x8, scoped, tag = 'scoped memory for tpu_custom_call.1']
    %8 = vsyncpa [#allocation3], 0
    %s9 = scalar_lea.sflag [#allocation3], 1
    %10 = vsyncpa %s9, 0
    loop: start=0, step=1, limit=5
    $region2: #{tpu_custom_call.1} parent=1 // loop_pre_header
      _
    $region3: #{tpu_custom_call.1} parent=1 // loop_header
      %s12 = sphi 0, %s16
      %p13 = scmp.ge.s32.totalorder %s12, 5
      %s22 = sphi 0, %s24
      %s25 = sphi 0, %s22
      %s26 = sphi 0, %s25
      %s42 = sphi 0, %s26
      %s48 = sphi 0, %s50
      %s51 = sphi 0, %s48
      %s52 = sphi 0, %s51
      %s68 = sphi 0, %s52
      %s74 = sphi 0, %s76
      %s77 = sphi 0, %s74
      %s78 = sphi 0, %s77
      %s94 = sphi 0, %s78
      %s100 = sphi 0, %s102
      %s103 = sphi 0, %s100
      %s104 = sphi 0, %s103
      %s120 = sphi 0, %s104
    $region4: #{tpu_custom_call.1} parent=1 // loop_header_branch
      %15 = sbr.rel (%p13) target = $region8
    $region5: #{tpu_custom_call.1} parent=1 // loop_body
      %s17 = ssub.s32 %s12, 1
      %s18 = ssub.s32 %s12, 2
      %s19 = sadd.s32 %s12, 1
      %s20 = ssub.s32 %s12, %s19
      %p21 = scmp.eq.s32.totalorder %s20, 0
      %s23 = sadd.s32 %s22, 1
      %s24 = scalar_select %p21, %s22, %s23
      %p27 = pneg %p21
      %p28 = scmp.eq.s32.totalorder %s12, 2
      %p29 = por %p27, %p28
      %p30 = scmp.ne.s32.totalorder %s22, %s25
      %p31 = scmp.eq.s32.totalorder %s12, 0
      %p32 = por %p30, %p31
      %p33 = scmp.ne.s32.totalorder %s22, %s25
      %p34 = scmp.eq.s32.totalorder %s17, 2
      %p35 = por %p33, %p34
      %p36 = scmp.ne.s32.totalorder %s25, %s26
      %p37 = scmp.eq.s32.totalorder %s17, 0
      %p38 = por %p36, %p37
      %p39 = scmp.ne.s32.totalorder %s25, %s26
      %p40 = scmp.eq.s32.totalorder %s18, 2
      %p41 = por %p39, %p40
      %p43 = scmp.ne.s32.totalorder %s26, %s42
      %p44 = scmp.eq.s32.totalorder %s18, 0
      %p45 = por %p43, %p44
      %s46 = ssub.s32 %s12, %s19
      %p47 = scmp.eq.s32.totalorder %s46, 0
      %s49 = sadd.s32 %s48, 1
      %s50 = scalar_select %p47, %s48, %s49
      %p53 = pneg %p47
      %p54 = scmp.eq.s32.totalorder %s12, 2
      %p55 = por %p53, %p54
      %p56 = scmp.ne.s32.totalorder %s48, %s51
      %p57 = scmp.eq.s32.totalorder %s12, 0
      %p58 = por %p56, %p57
      %p59 = scmp.ne.s32.totalorder %s48, %s51
      %p60 = scmp.eq.s32.totalorder %s17, 2
      %p61 = por %p59, %p60
      %p62 = scmp.ne.s32.totalorder %s51, %s52
      %p63 = scmp.eq.s32.totalorder %s17, 0
      %p64 = por %p62, %p63
      %p65 = scmp.ne.s32.totalorder %s51, %s52
      %p66 = scmp.eq.s32.totalorder %s18, 2
      %p67 = por %p65, %p66
      %p69 = scmp.ne.s32.totalorder %s52, %s68
      %p70 = scmp.eq.s32.totalorder %s18, 0
      %p71 = por %p69, %p70
      %s72 = ssub.s32 %s12, %s19
      %p73 = scmp.eq.s32.totalorder %s72, 0
      %s75 = sadd.s32 %s74, 1
      %s76 = scalar_select %p73, %s74, %s75
      %p79 = pneg %p73
      %p80 = scmp.eq.s32.totalorder %s12, 2
      %p81 = por %p79, %p80
      %p82 = scmp.ne.s32.totalorder %s74, %s77
      %p83 = scmp.eq.s32.totalorder %s12, 0
      %p84 = por %p82, %p83
      %p85 = scmp.ne.s32.totalorder %s74, %s77
      %p86 = scmp.eq.s32.totalorder %s17, 2
      %p87 = por %p85, %p86
      %p88 = scmp.ne.s32.totalorder %s77, %s78
      %p89 = scmp.eq.s32.totalorder %s17, 0
      %p90 = por %p88, %p89
      %p91 = scmp.ne.s32.totalorder %s77, %s78
      %p92 = scmp.eq.s32.totalorder %s18, 2
      %p93 = por %p91, %p92
      %p95 = scmp.ne.s32.totalorder %s78, %s94
      %p96 = scmp.eq.s32.totalorder %s18, 0
      %p97 = por %p95, %p96
      %s98 = ssub.s32 %s12, %s19
      %p99 = scmp.eq.s32.totalorder %s98, 0
      %s101 = sadd.s32 %s100, 1
      %s102 = scalar_select %p99, %s100, %s101
      %p105 = pneg %p99
      %p106 = scmp.eq.s32.totalorder %s12, 2
      %p107 = por %p105, %p106
      %p108 = scmp.ne.s32.totalorder %s100, %s103
      %p109 = scmp.eq.s32.totalorder %s12, 0
      %p110 = por %p108, %p109
      %p111 = scmp.ne.s32.totalorder %s100, %s103
      %p112 = scmp.eq.s32.totalorder %s17, 2
      %p113 = por %p111, %p112
      %p114 = scmp.ne.s32.totalorder %s103, %s104
      %p115 = scmp.eq.s32.totalorder %s17, 0
      %p116 = por %p114, %p115
      %p117 = scmp.ne.s32.totalorder %s103, %s104
      %p118 = scmp.eq.s32.totalorder %s18, 2
      %p119 = por %p117, %p118
      %p121 = scmp.ne.s32.totalorder %s104, %s120
      %p122 = scmp.eq.s32.totalorder %s18, 0
      %p123 = por %p121, %p122
      %p124 = scmp.le.s32.totalorder 1, %s12
      %p125 = scmp.lt.s32.totalorder %s12, 4
      %p126 = pnand %p124, %p125
      %p127 = pneg %p126
      // Predicated region
      $region9: #{tpu_custom_call.1} parent=5 // pred_check
        _
      $region10: #{tpu_custom_call.1} parent=5 // pred_check_branch
        %129 = sbr.rel (%p126) target = $region12
      $region11: #{tpu_custom_call.1} parent=5 // pred_region
        %s130 = ssub.s32 %s12, 1
      $region12: #{tpu_custom_call.1} parent=5 // pred_fallthru
        _
      %p131 = scmp.lt.s32.totalorder %s12, 3
      // Predicated region
      $region13: #{tpu_custom_call.1} parent=5 // pred_check
        %p132 = pneg %p131
      $region14: #{tpu_custom_call.1} parent=5 // pred_check_branch
        %134 = sbr.rel (%p132) target = $region16
      $region15: #{tpu_custom_call.1} parent=5 // pred_region
        // Predicated region
        $region17: #{tpu_custom_call.1} parent=15 // pred_check
          %p135 = pneg %p32
        $region18: #{tpu_custom_call.1} parent=15 // pred_check_branch
          %137 = sbr.rel (%p135) target = $region20
        $region19: #{tpu_custom_call.1} parent=15 // pred_region
          %p138 = scmp.lt.s32.totalorder %s12, 2
          %s139 = scalar_select %p138, %s12, 2
          %s140 = smul.addr %s139, 12
          %s141 = smul.addr %s140, 4
          %s142 = scalar_lea.vmem %s0, %s141
        $region20: #{tpu_custom_call.1} parent=15 // pred_fallthru
          _
        // Predicated region
        $region21: #{tpu_custom_call.1} parent=15 // pred_check
          %p143 = pneg %p58
        $region22: #{tpu_custom_call.1} parent=15 // pred_check_branch
          %145 = sbr.rel (%p143) target = $region24
        $region23: #{tpu_custom_call.1} parent=15 // pred_region
          %p146 = scmp.lt.s32.totalorder %s12, 2
          %s147 = scalar_select %p146, %s12, 2
          %s148 = smul.addr %s147, 10
          %s149 = smul.addr %s148, 4
          %s150 = scalar_lea.vmem %s1, %s149
        $region24: #{tpu_custom_call.1} parent=15 // pred_fallthru
          _
        // Predicated region
        $region25: #{tpu_custom_call.1} parent=15 // pred_check
          %p151 = pneg %p84
        $region26: #{tpu_custom_call.1} parent=15 // pred_check_branch
          %153 = sbr.rel (%p151) target = $region28
        $region27: #{tpu_custom_call.1} parent=15 // pred_region
          %p154 = scmp.lt.s32.totalorder %s12, 2
          %s155 = scalar_select %p154, %s12, 2
          %s156 = smul.addr %s155, 5
          %s157 = smul.addr %s156, 8
          %s158 = scalar_lea.vmem %s2, %s157
        $region28: #{tpu_custom_call.1} parent=15 // pred_fallthru
          _
      $region16: #{tpu_custom_call.1} parent=5 // pred_fallthru
        _
      %p159 = scmp.le.s32.totalorder 1, %s12
      %p160 = scmp.lt.s32.totalorder %s12, 4
      %p161 = pnand %p159, %p160
      %p162 = pneg %p161
      // Predicated region
      $region29: #{tpu_custom_call.1} parent=5 // pred_check
        _
      $region30: #{tpu_custom_call.1} parent=5 // pred_check_branch
        %164 = sbr.rel (%p161) target = $region32
      $region31: #{tpu_custom_call.1} parent=5 // pred_region
        %s165 = ssub.s32 %s12, 1
        %p166 = scmp.lt.s32.totalorder %s17, 2
        %s167 = scalar_select %p166, %s17, 2
        %s168 = smul.addr %s167, 12
        %s169 = smul.addr %s168, 4
        %s170 = scalar_lea.vmem %s0, %s169
        %p171 = pneg %p38
        %p172 = pneg %p35
        %p173 = scmp.lt.s32.totalorder %s17, 2
        %s174 = scalar_select %p173, %s17, 2
        %s175 = smul.addr %s174, 10
        %s176 = smul.addr %s175, 4
        %s177 = scalar_lea.vmem %s1, %s176
        %p178 = pneg %p64
        %p179 = pneg %p61
        %p180 = scmp.lt.s32.totalorder %s17, 2
        %s181 = scalar_select %p180, %s17, 2
        %s182 = smul.addr %s181, 5
        %s183 = smul.addr %s182, 8
        %s184 = scalar_lea.vmem %s2, %s183
        %p185 = pneg %p90
        %p186 = pneg %p87
        %p187 = pneg %p116
        %p188 = pneg %p113
        %s189 = sand.u32 %s103, 1
        %s190 = scalar_lea.sflag [#allocation3], %s189
        %s191 = sand.u32 %s103, 1
        %s192 = smul.addr %s191, 40
        %s193 = scalar_lea.vmem [#allocation2], %s192
        %p194 = scmp.lt.s32.totalorder %s17, 2
        %s195 = scalar_select %p194, %s17, 2
        %s196 = smul.addr %s195, 12
        %s197 = smul.addr %s196, 4
        %s198 = scalar_lea.vmem %s0, %s197
        %p199 = scmp.lt.s32.totalorder %s17, 2
        %s200 = scalar_select %p199, %s17, 2
        %s201 = smul.addr %s200, 10
        %s202 = smul.addr %s201, 4
        %s203 = scalar_lea.vmem %s1, %s202
        %p204 = scmp.lt.s32.totalorder %s17, 2
        %s205 = scalar_select %p204, %s17, 2
        %s206 = smul.addr %s205, 5
        %s207 = smul.addr %s206, 8
        %s208 = scalar_lea.vmem %s2, %s207
        %v210 = vld [vmem:[%s198] sm:$0xf]
        %v211 = vld [vmem:[%s198 + $0x4] sm:$0xf]
        %v212 = vld [vmem:[%s198 + $0x8] sm:$0x3]
        %v216 = vunpack.c.l.b16 %v210
        %v217 = vunpack.c.l.b16 %v211
        %v218 = vunpack.c.l.b16 %v212
        %v219 = vpack.c.b16 %v217, %v216
        %v220 = vpack.c.b16 %v218, %v218
        %vm221 = vcmask 1041408
        %v222 = vrot.slane %v219, 6
        %v223 = vrot.slane %v220, 6
        %v224 = vsel %vm221, %v222, %v223
        %225 = vrot.lane.b32.xlu0 %v222, 127
        %v226 = vpop.permute.xlu0 %225
        %227 = vrot.lane.b32.xlu0 %v224, 127
        %v228 = vpop.permute.xlu0 %227
        %v229 = vpack.c.b16 %v216, %v216
        %v230 = vpack.c.b16 %v218, %v217
        %231 = vrot.lane.b32.xlu0 %v229, 126
        %v232 = vpop.permute.xlu0 %231
        %233 = vrot.lane.b32.xlu0 %v230, 126
        %v234 = vpop.permute.xlu0 %233
        %vm235 = vcmask 1045504
        %v236 = vrot.slane %v219, 2
        %v237 = vrot.slane %v220, 2
        %v238 = vsel %vm235, %v236, %v237
        %239 = vrot.lane.b32.xlu0 %v236, 125
        %v240 = vpop.permute.xlu0 %239
        %241 = vrot.lane.b32.xlu0 %v238, 125
        %v242 = vpop.permute.xlu0 %241
        %243 = vrot.lane.b32.xlu0 %v219, 124
        %v244 = vpop.permute.xlu0 %243
        %245 = vrot.lane.b32.xlu0 %v220, 124
        %v246 = vpop.permute.xlu0 %245
        %247 = vrot.lane.b32.xlu0 %v222, 123
        %v248 = vpop.permute.xlu0 %247
        %249 = vrot.lane.b32.xlu0 %v224, 123
        %v250 = vpop.permute.xlu0 %249
        %251 = vrot.lane.b32.xlu0 %v229, 122
        %v252 = vpop.permute.xlu0 %251
        %253 = vrot.lane.b32.xlu0 %v230, 122
        %v254 = vpop.permute.xlu0 %253
        %vm255 = vcmask 1041408
        %v258 = vsel %vm255, %v220, %v226
        %vm259 = vcmask 1043456
        %v262 = vsel %vm259, %v228, %v232
        %vm263 = vcmask 1045504
        %v266 = vsel %vm263, %v234, %v240
        %v269 = vsel %vm255, %v246, %v248
        %v272 = vsel %vm259, %v250, %v252
        %s273 = scalar_lea.vmem %s198, 12
        %v274 = vld [vmem:[%s273] sm:$0xf]
        %v275 = vld [vmem:[%s273 + $0x4] sm:$0xf]
        %v276 = vld [vmem:[%s273 + $0x8] sm:$0x3]
        %v280 = vunpack.c.l.b16 %v274
        %v281 = vunpack.c.l.b16 %v275
        %v282 = vunpack.c.l.b16 %v276
        %v283 = vpack.c.b16 %v281, %v280
        %v284 = vpack.c.b16 %v282, %v282
        %v285 = vrot.slane %v283, 6
        %v286 = vrot.slane %v284, 6
        %v287 = vsel %vm221, %v285, %v286
        %288 = vrot.lane.b32.xlu0 %v285, 127
        %v289 = vpop.permute.xlu0 %288
        %290 = vrot.lane.b32.xlu0 %v287, 127
        %v291 = vpop.permute.xlu0 %290
        %v292 = vpack.c.b16 %v280, %v280
        %v293 = vpack.c.b16 %v282, %v281
        %294 = vrot.lane.b32.xlu0 %v292, 126
        %v295 = vpop.permute.xlu0 %294
        %296 = vrot.lane.b32.xlu0 %v293, 126
        %v297 = vpop.permute.xlu0 %296
        %v298 = vrot.slane %v283, 2
        %v299 = vrot.slane %v284, 2
        %v300 = vsel %vm235, %v298, %v299
        %301 = vrot.lane.b32.xlu0 %v298, 125
        %v302 = vpop.permute.xlu0 %301
        %303 = vrot.lane.b32.xlu0 %v300, 125
        %v304 = vpop.permute.xlu0 %303
        %305 = vrot.lane.b32.xlu0 %v283, 124
        %v306 = vpop.permute.xlu0 %305
        %307 = vrot.lane.b32.xlu0 %v284, 124
        %v308 = vpop.permute.xlu0 %307
        %309 = vrot.lane.b32.xlu0 %v285, 123
        %v310 = vpop.permute.xlu0 %309
        %311 = vrot.lane.b32.xlu0 %v287, 123
        %v312 = vpop.permute.xlu0 %311
        %313 = vrot.lane.b32.xlu0 %v292, 122
        %v314 = vpop.permute.xlu0 %313
        %315 = vrot.lane.b32.xlu0 %v293, 122
        %v316 = vpop.permute.xlu0 %315
        %v319 = vsel %vm255, %v284, %v289
        %v322 = vsel %vm259, %v291, %v295
        %v325 = vsel %vm263, %v297, %v302
        %v328 = vsel %vm255, %v308, %v310
        %v331 = vsel %vm259, %v312, %v314
        %337 = vrot.lane.b32.xlu0 %v283, 29
        %v338 = vpop.permute.xlu0 %337
        %339 = vrot.lane.b32.xlu0 %v319, 29
        %v340 = vpop.permute.xlu0 %339
        %341 = vrot.lane.b32.xlu0 %v322, 29
        %v342 = vpop.permute.xlu0 %341
        %343 = vrot.lane.b32.xlu0 %v325, 29
        %v344 = vpop.permute.xlu0 %343
        %345 = vrot.lane.b32.xlu0 %v304, 29
        %v346 = vpop.permute.xlu0 %345
        %347 = vrot.lane.b32.xlu0 %v306, 29
        %v348 = vpop.permute.xlu0 %347
        %349 = vrot.lane.b32.xlu0 %v328, 29
        %v350 = vpop.permute.xlu0 %349
        %351 = vrot.lane.b32.xlu0 %v331, 29
        %v352 = vpop.permute.xlu0 %351
        %353 = vrot.lane.b32.xlu0 %v316, 29
        %v354 = vpop.permute.xlu0 %353
        %vm355 = vcmask 236544
        %v358 = vsel %vm355, %v219, %v338
        %v361 = vsel %vm355, %v258, %v340
        %v364 = vsel %vm355, %v262, %v342
        %v367 = vsel %vm355, %v266, %v344
        %v371 = vsel %vm355, %v242, %v346
        %v375 = vsel %vm355, %v244, %v348
        %v378 = vsel %vm355, %v269, %v350
        %v381 = vsel %vm355, %v272, %v352
        %v385 = vsel %vm355, %v254, %v354
        %v386 = vld [vmem:[%s203] sm:$0xff]
        %v387 = vld [vmem:[%s203 + $0x8] sm:$0xff]
        %v388 = vld [vmem:[%s203 + $0x10] sm:$0xff]
        %v389 = vld [vmem:[%s203 + $0x18] sm:$0xff]
        %v390 = vld [vmem:[%s203 + $0x20] sm:$0xff]
        %v391 = vld [vmem:[%s208] sm:$0xff]
        %v392 = vld [vmem:[%s208 + $0x8] sm:$0xff]
        %v393 = vld [vmem:[%s208 + $0x10] sm:$0xff]
        %v394 = vld [vmem:[%s208 + $0x18] sm:$0xff]
        %v395 = vld [vmem:[%s208 + $0x20] sm:$0xff]
        %397 = vset.pattern.permute.xlu0 0
        %398 = vperm.xlu0 %397, %v391
        %v399 = vpop.permute.xlu0 %398
        %402 = vset.pattern.permute.xlu0 0
        %403 = vperm.xlu0 %402, %v392
        %v404 = vpop.permute.xlu0 %403
        %407 = vset.pattern.permute.xlu0 0
        %408 = vperm.xlu0 %407, %v393
        %v409 = vpop.permute.xlu0 %408
        %412 = vset.pattern.permute.xlu0 0
        %413 = vperm.xlu0 %412, %v394
        %v414 = vpop.permute.xlu0 %413
        %417 = vset.pattern.permute.xlu0 0
        %418 = vperm.xlu0 %417, %v395
        %v419 = vpop.permute.xlu0 %418
        %v426 = vunpack.c.l.b16 %v386
        %v427 = vunpack.c.h.b16 %v386
        %v428 = vunpack.c.l.b16 %v387
        %v429 = vunpack.c.h.b16 %v387
        %v430 = vunpack.c.l.b16 %v388
        %v431 = vunpack.c.h.b16 %v388
        %v432 = vunpack.c.l.b16 %v389
        %v433 = vunpack.c.h.b16 %v389
        %v434 = vunpack.c.l.b16 %v390
        %v435 = vunpack.c.h.b16 %v390
        %v436 = vpack.c.b16 %v428, %v426
        %v437 = vpack.c.b16 %v429, %v427
        %v438 = vpack.c.b16 %v432, %v430
        %v439 = vpack.c.b16 %v433, %v431
        %v440 = vpack.c.b16 %v434, %v434
        %v441 = vpack.c.b16 %v435, %v435
        %vm445 = vcmask 97280
        %v447 = vsel %vm445, %v437, 0
        %v450 = vsel %vm445, %v439, 0
        %v453 = vsel %vm445, %v441, 0
        %v455 = vsel %vm263, %v385, 0
        %457 = vmatprep.subr.bf16.mxu0 0
        %458 = vmatpush1.bf16.msra.mxu0 %v358
        %459 = vmatprep.subr.bf16.mxu0 0
        %460 = vmatpush1.bf16.msra.mxu0 %v361
        %461 = vmatprep.subr.bf16.mxu0 0
        %462 = vmatpush1.bf16.msra.mxu0 %v364
        %463 = vmatprep.subr.bf16.mxu0 0
        %464 = vmatpush1.bf16.msra.mxu0 %v367
        %465 = vmatprep.subr.bf16.mxu0 0
        %466 = vmatpush1.bf16.msra.mxu0 %v371
        %467 = vmatprep.subr.bf16.mxu0 0
        %468 = vmatpush1.bf16.msra.mxu0 %v375
        %469 = vmatprep.subr.bf16.mxu0 0
        %470 = vmatpush1.bf16.msra.mxu0 %v378
        %471 = vmatprep.subr.bf16.mxu0 0
        %472 = vmatpush1.bf16.msra.mxu0 %v381
        %473 = vmatprep.subr.bf16.mxu0 0
        %474 = vmatpush1.bf16.msra.mxu0 %v455
        %475 = vmatprep.subr.bf16.mxu0 0
        %476 = vmatpush1.bf16.msra.mxu0 0
        %477 = vmatprep.subr.bf16.mxu0 0
        %478 = vmatpush1.bf16.msra.mxu0 0
        %479 = vmatprep.subr.bf16.mxu0 0
        %480 = vmatpush1.bf16.msra.mxu0 0
        %481 = vmatprep.subr.bf16.mxu0 0
        %482 = vmatpush1.bf16.msra.mxu0 0
        %483 = vmatprep.subr.bf16.mxu0 0
        %484 = vmatpush1.bf16.msra.mxu0 0
        %485 = vmatprep.subr.bf16.mxu0 0
        %486 = vmatpush1.bf16.msra.mxu0 0
        %487 = vmatprep.subr.bf16.mxu0 0
        %488 = vmatpush1.bf16.msra.mxu0 0
        %489 = vmatprep.mubr.bf16.mxu0 %v447
        %490 = vmatmul.mubr.bf16.gmra.mrb[0].mxu0 %v436
        %v491 = vpop.f32.mrb[0].mxu0
        %v492 = vadd.f32 %v399, %v491
        %v493 = vpop.f32.mrb[0].mxu0
        %v494 = vpop.f32.mrb[0].mxu0
        %v495 = vadd.f32 %v404, %v494
        %v496 = vpop.f32.mrb[0].mxu0
        %497 = vmatprep.mubr.bf16.mxu0 %v450
        %498 = vmatmul.mubr.bf16.gmra.mrb[0].mxu0 %v438
        %v499 = vpop.f32.mrb[0].mxu0
        %v500 = vadd.f32 %v409, %v499
        %v501 = vpop.f32.mrb[0].mxu0
        %v502 = vpop.f32.mrb[0].mxu0
        %v503 = vadd.f32 %v414, %v502
        %v504 = vpop.f32.mrb[0].mxu0
        %505 = vmatprep.mubr.bf16.mxu0 %v453
        %506 = vmatmul.mubr.bf16.gmra.mrb[0].mxu0 %v440
        %v507 = vpop.f32.mrb[0].mxu0
        %v508 = vadd.f32 %v419, %v507
        %v509 = vpop.f32.mrb[0].mxu0
        %v510 = vpop.f32.mrb[0].mxu0
        %v511 = vpop.f32.mrb[0].mxu0
        %512 = vdwg.mxu0
        %vm513 = vcmp.ge.f32.partialorder %v492, 0.0
        %vm514 = vcmp.ge.f32.partialorder %v495, 0.0
        %vm515 = vcmp.ge.f32.partialorder %v500, 0.0
        %vm516 = vcmp.ge.f32.partialorder %v503, 0.0
        %vm517 = vcmp.ge.f32.partialorder %v508, 0.0
        %v518 = vmul.f32 %v492, 0.2
        %v519 = vmul.f32 %v495, 0.2
        %v520 = vmul.f32 %v500, 0.2
        %v521 = vmul.f32 %v503, 0.2
        %v522 = vmul.f32 %v508, 0.2
        %v523 = vsel %vm513, %v492, %v518
        %v524 = vsel %vm514, %v495, %v519
        %v525 = vsel %vm515, %v500, %v520
        %v526 = vsel %vm516, %v503, %v521
        %v527 = vsel %vm517, %v508, %v522
        %vm528 = vcmask 474112
        %529 = vst.msk [vmem:[%s193] sm:$0xff] %vm528, %v523
        %530 = vst.msk [vmem:[%s193 + $0x8] sm:$0xff] %vm528, %v524
        %531 = vst.msk [vmem:[%s193 + $0x10] sm:$0xff] %vm528, %v525
        %532 = vst.msk [vmem:[%s193 + $0x18] sm:$0xff] %vm528, %v526
        %533 = vst.msk [vmem:[%s193 + $0x20] sm:$0xff] %vm528, %v527
        %s534 = sand.u32 %s103, 1
        %s535 = scalar_lea.sflag [#allocation3], %s534
        %s536 = sand.u32 %s103, 1
        %s537 = smul.addr %s536, 40
        %s538 = scalar_lea.vmem [#allocation2], %s537
        // Predicated region
        $region33: #{tpu_custom_call.1} parent=31 // pred_check
          %p539 = pneg %p113
        $region34: #{tpu_custom_call.1} parent=31 // pred_check_branch
          %541 = sbr.rel (%p539) target = $region36
        $region35: #{tpu_custom_call.1} parent=31 // pred_region
          %s543 = ssub.s32 640, 640
          %544 = vsyncadd %s535, %s543
          %s545 = smul.addr %s17, 5
          %s546 = smul.addr %s545, 128
          %s547 = scalar_lea.hbm %s3, %s546
          %s548 = sshll.u32 %s538, 4
          %s549 = int_to_ptr.vmem [resolvable:$true] %s548
          %554 = dma.vmem_to_hbm [thread:$0]  %s549, 640, %s547, %s535, 128, 128, 8
        $region36: #{tpu_custom_call.1} parent=31 // pred_fallthru
          _
      $region32: #{tpu_custom_call.1} parent=5 // pred_fallthru
        _
      %p555 = scmp.le.s32.totalorder 2, %s12
      // Predicated region
      $region37: #{tpu_custom_call.1} parent=5 // pred_check
        %p556 = pneg %p555
      $region38: #{tpu_custom_call.1} parent=5 // pred_check_branch
        %558 = sbr.rel (%p556) target = $region40
      $region39: #{tpu_custom_call.1} parent=5 // pred_region
        %s559 = ssub.s32 %s12, 2
        // Predicated region
        $region41: #{tpu_custom_call.1} parent=39 // pred_check
          %p560 = pneg %p119
        $region42: #{tpu_custom_call.1} parent=39 // pred_check_branch
          %562 = sbr.rel (%p560) target = $region44
        $region43: #{tpu_custom_call.1} parent=39 // pred_region
          %s563 = sand.u32 %s104, 1
          %s564 = scalar_lea.sflag [#allocation3], %s563
          %s565 = sand.u32 %s104, 1
          %s566 = smul.addr %s565, 40
          %s567 = scalar_lea.vmem [#allocation2], %s566
          %568 = dma.done %s564, 640
        $region44: #{tpu_custom_call.1} parent=39 // pred_fallthru
          _
      $region40: #{tpu_custom_call.1} parent=5 // pred_fallthru
        _
    $region6: #{tpu_custom_call.1} parent=1 // loop_footer
      %s16 = sadd.s32 1, %s12
    $region7: #{tpu_custom_call.1} parent=1 // loop_footer_branch
      %11 = sbr.rel target = $region3
    $region8: #{tpu_custom_call.1} parent=1 // loop_exit
      _
    %569 = vsyncpa [#allocation3], 1
    %s570 = scalar_lea.sflag [#allocation3], 1
    %571 = vsyncpa %s570, 1

</llo_original>
